<compile_context>
chip_gen: v6e
topology: v6e:2x2x1
jax: 0.10.0
libtpu: 0.0.40
codegen_flags: <defaults>
</compile_context>

<pallas_src>
from functools import partial

import jax
import jax.numpy as jnp
from jax.experimental import pallas as pl
from jax.experimental.pallas import tpu as pltpu


def _object_model_kernel(x_ref, small_ref, w_ref, out_ref):
    # x_ref:     (rows, 1)   f32  batch block of scalar inputs (padded rows = 0)
    # small_ref: (8, 128)    f32  packed small params:
    #              row 0: w1 (l1.weight, in=1 -> 128 lanes)
    #              row 1: b1
    #              row 2: b2
    #              row 3: output bias row (bm in lane 0, zeros elsewhere)
    # w_ref:     (256, 128)  bf16 packed big params:
    #              rows   0..127: l2.weight^T (in x out)
    #              rows 128..255: mean-head matrix (column 0 = r_mean.weight)
    # out_ref:   (rows, 128) f32  lane 0 of each row holds r_mean; other lanes 0
    w1 = small_ref[0:1, :]          # (1, 128)
    b1 = small_ref[1:2, :]          # (1, 128)
    b2 = small_ref[2:3, :]          # (1, 128)
    out_bias = small_ref[3:4, :]    # (1, 128)  bm in lane 0

    x = x_ref[...]                                                  # (rows, 1) f32

    # layer 1: Linear(1, 128) + relu  -> broadcasted scale + bias on VPU (f32)
    h1 = jnp.maximum(x * w1 + b1, 0.0)                              # (rows, 128)

    # layer 2: Linear(128, 128) + relu -> bf16 x bf16 MXU matmul, f32 accumulate
    h2 = jnp.dot(h1.astype(jnp.bfloat16), w_ref[0:128, :],
                 preferred_element_type=jnp.float32)                # (rows, 128)
    h2 = jnp.maximum(h2 + b2, 0.0)

    # r_mean head as a second MXU matmul (vector-extended slot has huge slack):
    # column 0 of the mean-head matrix = wm, other columns 0, so this writes the
    # lane-dense output tile directly (mean in lane 0, zeros elsewhere).
    out_ref[...] = jnp.dot(h2.astype(jnp.bfloat16), w_ref[128:256, :],
                           preferred_element_type=jnp.float32) + out_bias
    # r_log_std = clamp(., 0, 0) is identically zero -> handled in the wrapper.


def pack_params(params):
    """Pack params: one (8,128) f32 tile + one (256,128) bf16 weights tile."""
    small = jnp.zeros((8, 128), jnp.float32)
    small = small.at[0, :].set(params["w1"].reshape(128))
    small = small.at[1, :].set(params["b1"].reshape(128))
    small = small.at[2, :].set(params["b2"].reshape(128))
    small = small.at[3, 0].set(params["bm"].reshape(()))

    wm_mat = jnp.zeros((128, 128), jnp.float32)
    wm_mat = wm_mat.at[:, 0].set(params["wm"].reshape(128))
    weights = jnp.concatenate([params["w2"], wm_mat], axis=0).astype(jnp.bfloat16)
    return small, weights


@jax.jit
def object_model_forward_batched(xs, small, weights):
    """xs: (B,) f32 scalar inputs. Returns (r_mean (B,), r_log_std (B,))."""
    B = xs.shape[0]
    # Block of 256 rows per grid step (review: amortizes per-step overhead and
    # fills the 256-wide MXU on v6e/v7x); for small B use the whole padded batch.
    if B >= 256:
        block_rows = 256
    else:
        block_rows = max(8, ((B + 7) // 8) * 8)
    Bp = ((B + block_rows - 1) // block_rows) * block_rows
    n_blocks = Bp // block_rows

    # Pad + slice happen inside this jit so they fuse with the kernel dispatch.
    x_pad = jnp.zeros((Bp, 1), jnp.float32).at[:B, 0].set(xs.astype(jnp.float32))

    out = pl.pallas_call(
        _object_model_kernel,
        out_shape=jax.ShapeDtypeStruct((Bp, 128), jnp.float32),
        grid=(n_blocks,),
        in_specs=[
            pl.BlockSpec((block_rows, 1), lambda i: (i, 0)),
            # Constant index_maps: weights stay VMEM-resident across the grid.
            pl.BlockSpec((8, 128), lambda i: (0, 0)),
            pl.BlockSpec((256, 128), lambda i: (0, 0)),
        ],
        out_specs=pl.BlockSpec((block_rows, 128), lambda i: (i, 0)),
        compiler_params=pltpu.CompilerParams(
            dimension_semantics=("parallel",)),
    )(x_pad, small, weights)

    # NOTE: padded rows (x=0) do NOT produce zero outputs (relu(b1) != 0); they
    # are garbage and must be sliced off here — never consume out beyond row B.
    r_mean = out[:B, 0]
    r_log_std = jnp.zeros((B,), jnp.float32)   # clamp(x, 0, 0) == 0 identically
    return r_mean, r_log_std
    # TODO(synk): for very large rollout batches, lane-pack 128 per-row means
    # into one output row to cut the 128x output write amplification.


def object_model_forward(x, packed):
    """Single forward matching ObjectModel.forward(): returns ((1,), (1,))."""
    small, weights = packed
    r_mean, r_log_std = object_model_forward_batched(x.reshape(1), small, weights)
    return r_mean.reshape(1), r_log_std.reshape(1)


def init_params(key):
    """Deterministic init matching the nn.Linear shapes in __init__."""
    k1, k2, k3, k4, k5, k6, k7, k8 = jax.random.split(key, 8)

    def u(k, shape, fan_in):
        bound = 1.0 / jnp.sqrt(fan_in)
        return jax.random.uniform(k, shape, jnp.float32, -bound, bound)

    return {
        # l1: Linear(1, 128)  -> stored transposed (in, out)
        "w1": u(k1, (1, 128), 1.0),
        "b1": u(k2, (1, 128), 1.0),
        # l2: Linear(128, 128) -> stored transposed (in, out)
        "w2": u(k3, (128, 128), 128.0),
        "b2": u(k4, (1, 128), 128.0),
        # r_mean: Linear(128, 1) -> weight row (1, 128), bias (1, 1)
        "wm": u(k5, (1, 128), 128.0),
        "bm": u(k6, (1, 1), 128.0),
        # r_log_std: Linear(128, 1) -> clamp(.,0,0) makes this dead; kept only
        # so init matches the torch module's parameter set.
        "ws": u(k7, (1, 128), 128.0),
        "bs": u(k8, (1, 1), 128.0),
    }


def reference_forward(xs, params):
    """Pure-JAX reference mirroring the kernel's bf16 matmul operands."""
    x = xs.reshape(-1, 1).astype(jnp.float32)
    h1 = jnp.maximum(x * params["w1"] + params["b1"], 0.0)
    w2 = params["w2"].astype(jnp.bfloat16).astype(jnp.float32)
    h1b = h1.astype(jnp.bfloat16).astype(jnp.float32)
    h2 = jnp.maximum(h1b @ w2 + params["b2"], 0.0)
    h2b = h2.astype(jnp.bfloat16).astype(jnp.float32)
    wmb = params["wm"].astype(jnp.bfloat16).astype(jnp.float32)
    r_mean = jnp.sum(h2b * wmb, axis=-1) + params["bm"].reshape(())
    r_log_std = jnp.zeros_like(r_mean)   # clamp(x, 0, 0) == 0
    return r_mean, r_log_std


if __name__ == "__main__":
    key = jax.random.PRNGKey(0)
    pkey, xkey = jax.random.split(key)
    params = init_params(pkey)
    packed = pack_params(params)

    # forward() draws its own randn(1) input; emulate deterministically here.
    x = jax.random.normal(xkey, (1,), jnp.float32)

    r_mean, r_log_std = object_model_forward(x, packed)
    jax.block_until_ready((r_mean, r_log_std))

    ref_mean, ref_logstd = reference_forward(x, params)
    assert jnp.allclose(r_mean, ref_mean.reshape(1), atol=1e-3, rtol=1e-3), (r_mean, ref_mean)
    assert jnp.allclose(r_log_std, ref_logstd.reshape(1), atol=1e-6), (r_log_std, ref_logstd)
    assert r_mean.shape == (1,) and r_log_std.shape == (1,)

    # Batched path, small batch (single grid step, Bp=16).
    xb = jax.random.normal(jax.random.PRNGKey(1), (16,), jnp.float32)
    bm_mean, bm_logstd = object_model_forward_batched(xb, *packed)
    jax.block_until_ready((bm_mean, bm_logstd))
    rb_mean, rb_logstd = reference_forward(xb, params)
    assert jnp.allclose(bm_mean, rb_mean, atol=1e-3, rtol=1e-3)
    assert jnp.allclose(bm_logstd, rb_logstd, atol=1e-6)

    # Batched path, multi-block grid (B=600 -> 3 grid steps of 256 rows,
    # weights VMEM-resident across steps, partial last block sliced off).
    xl = jax.random.normal(jax.random.PRNGKey(2), (600,), jnp.float32)
    lg_mean, lg_logstd = object_model_forward_batched(xl, *packed)
    jax.block_until_ready((lg_mean, lg_logstd))
    rl_mean, rl_logstd = reference_forward(xl, params)
    assert jnp.allclose(lg_mean, rl_mean, atol=1e-3, rtol=1e-3)
    assert jnp.allclose(lg_logstd, rl_logstd, atol=1e-6)

    # TODO(synk): sample()/crystallization()/update() (Normal sampling, mesh
    # growth/normalize, Adam step) are host-side logic, not forward hot path.

    print("KERNEL_OK")
</pallas_src>

<mosaic_0001>
module attributes {stable_mosaic.version = 11 : i64} {
  func.func @_object_model_kernel(%arg0: i32, %arg1: memref<8x1xf32, #tpu.memory_space<vmem>>, %arg2: memref<8x128xf32, #tpu.memory_space<vmem>>, %arg3: memref<256x128xbf16, #tpu.memory_space<vmem>>, %arg4: memref<8x128xf32, #tpu.memory_space<vmem>>) attributes {dimension_semantics = [#tpu.dimension_semantics<parallel>], iteration_bounds = array<i64: 1>, scalar_prefetch = 0 : i64, scratch_operands = 0 : i64, tpu.core_type = #tpu.core_type<tc>, window_params = [{transform_indices = @transform_0, window_bounds = array<i64: 8, 1>}, {pipeline_mode = #tpu.pipeline_mode<synchronous>, transform_indices = @transform_1, window_bounds = array<i64: 8, 128>}, {pipeline_mode = #tpu.pipeline_mode<synchronous>, transform_indices = @transform_2, window_bounds = array<i64: 256, 128>}, {transform_indices = @transform_3, window_bounds = array<i64: 8, 128>}]} {
    %c0 = arith.constant 0 : index
    %c0_0 = arith.constant 0 : index
    %0 = vector.load %arg2[%c0, %c0_0] : memref<8x128xf32, #tpu.memory_space<vmem>>, vector<1x128xf32>
    %c1 = arith.constant 1 : index
    %c0_1 = arith.constant 0 : index
    %1 = vector.load %arg2[%c1, %c0_1] : memref<8x128xf32, #tpu.memory_space<vmem>>, vector<1x128xf32>
    %c2 = arith.constant 2 : index
    %c0_2 = arith.constant 0 : index
    %2 = vector.load %arg2[%c2, %c0_2] : memref<8x128xf32, #tpu.memory_space<vmem>>, vector<1x128xf32>
    %c3 = arith.constant 3 : index
    %c0_3 = arith.constant 0 : index
    %3 = vector.load %arg2[%c3, %c0_3] : memref<8x128xf32, #tpu.memory_space<vmem>>, vector<1x128xf32>
    %c0_4 = arith.constant 0 : index
    %c0_5 = arith.constant 0 : index
    %4 = vector.load %arg1[%c0_4, %c0_5] : memref<8x1xf32, #tpu.memory_space<vmem>>, vector<8x1xf32>
    %5 = vector.broadcast %4 : vector<8x1xf32> to vector<8x128xf32>
    %6 = vector.broadcast %0 : vector<1x128xf32> to vector<8x128xf32>
    %7 = arith.mulf %5, %6 : vector<8x128xf32>
    %8 = vector.broadcast %1 : vector<1x128xf32> to vector<8x128xf32>
    %9 = arith.addf %7, %8 : vector<8x128xf32>
    %cst = arith.constant 0.000000e+00 : f32
    %10 = vector.broadcast %cst : f32 to vector<8x128xf32>
    %11 = arith.maximumf %9, %10 : vector<8x128xf32>
    %12 = arith.truncf %11 : vector<8x128xf32> to vector<8x128xbf16>
    %c0_6 = arith.constant 0 : index
    %c0_7 = arith.constant 0 : index
    %13 = vector.load %arg3[%c0_6, %c0_7] : memref<256x128xbf16, #tpu.memory_space<vmem>>, vector<128x128xbf16>
    %cst_8 = arith.constant dense<0.000000e+00> : vector<8x128xf32>
    %14 = tpu.matmul %12, %13, %cst_8 {dimension_numbers = #tpu.dot_dimension_numbers<[1], [0], [0], [1], [0, 0, 1, 1], [], []>} : vector<8x128xbf16>, vector<128x128xbf16>, vector<8x128xf32> -> vector<8x128xf32>
    %15 = vector.broadcast %2 : vector<1x128xf32> to vector<8x128xf32>
    %16 = arith.addf %14, %15 : vector<8x128xf32>
    %cst_9 = arith.constant 0.000000e+00 : f32
    %17 = vector.broadcast %cst_9 : f32 to vector<8x128xf32>
    %18 = arith.maximumf %16, %17 : vector<8x128xf32>
    %19 = arith.truncf %18 : vector<8x128xf32> to vector<8x128xbf16>
    %c128 = arith.constant 128 : index
    %c0_10 = arith.constant 0 : index
    %20 = vector.load %arg3[%c128, %c0_10] : memref<256x128xbf16, #tpu.memory_space<vmem>>, vector<128x128xbf16>
    %cst_11 = arith.constant dense<0.000000e+00> : vector<8x128xf32>
    %21 = tpu.matmul %19, %20, %cst_11 {dimension_numbers = #tpu.dot_dimension_numbers<[1], [0], [0], [1], [0, 0, 1, 1], [], []>} : vector<8x128xbf16>, vector<128x128xbf16>, vector<8x128xf32> -> vector<8x128xf32>
    %22 = vector.broadcast %3 : vector<1x128xf32> to vector<8x128xf32>
    %23 = arith.addf %21, %22 : vector<8x128xf32>
    %c0_12 = arith.constant 0 : index
    %c0_13 = arith.constant 0 : index
    %24 = vector.load %arg4[%c0_12, %c0_13] : memref<8x128xf32, #tpu.memory_space<vmem>>, vector<8x128xf32>
    tpu.vector_store %arg4[%c0_12, %c0_13], %23 {strides = array<i32>} : memref<8x128xf32, #tpu.memory_space<vmem>>, vector<8x128xf32>,
    return
  }
  func.func @transform_0(%arg0: i32) -> (i32, i32) {
    %c0_i32 = arith.constant 0 : i32
    %c0_i32_0 = arith.constant 0 : i32
    return %arg0, %c0_i32 : i32, i32
  }
  func.func @transform_1(%arg0: i32) -> (i32, i32) {
    %c0_i32 = arith.constant 0 : i32
    %c0_i32_0 = arith.constant 0 : i32
    %c0_i32_1 = arith.constant 0 : i32
    return %c0_i32, %c0_i32_0 : i32, i32
  }
  func.func @transform_2(%arg0: i32) -> (i32, i32) {
    %c0_i32 = arith.constant 0 : i32
    %c0_i32_0 = arith.constant 0 : i32
    %c0_i32_1 = arith.constant 0 : i32
    return %c0_i32, %c0_i32_0 : i32, i32
  }
  func.func @transform_3(%arg0: i32) -> (i32, i32) {
    %c0_i32 = arith.constant 0 : i32
    %c0_i32_0 = arith.constant 0 : i32
    return %arg0, %c0_i32 : i32, i32
  }
}

</mosaic_0001>

<llo_original>
// kernel: object_model_forward_batched.1
$region0: #{object_model_forward_batched.1}
  #allocation0 [shape = 'u32[]', space=smem, size = 0x4, offset = 0x4, fixed_abs, tag = 'smem constant byte address 0x4 - core index']
  #allocation1 [shape = 'u32[144,128]{1,0:T(1,128)}', space=vmem, size = 0x12000, scoped, tag = 'internal scratch']
  %s0 = inlined_call_operand.vmem [shape: f32[8,1], index: 0, kind: input, shape index: {}]
  %s1 = inlined_call_operand.vmem [shape: f32[8,128], index: 1, kind: input, shape index: {}]
  %s2 = inlined_call_operand.hbm [shape: bf16[256,128], index: 2, kind: input, shape index: {}]
  %s3 = inlined_call_operand.vmem [shape: f32[8,128], index: 3, kind: output, shape index: {}]
  %s4 = sld [smem:[#allocation0]]
  $region26: #{object_model_forward_batched.1} parent=0
    _
  %s6 = ssub.s32 1, %s4
  %s7 = scalar_select 0, %s6, %s4
  $region1: #{object_model_forward_batched.1} parent=0
    #allocation2 [shape = 'u8[65536]{0}', space=vmem, size = 0x10000, scoped, tag = 'input window, operand 2, single buffered']
    #allocation3 [shape = 's32[1]{0}', space=sflag, size = 0x4, scoped, tag = 'scoped memory for object_model_forward_batched.1']
    %8 = vsyncpa [#allocation3], 0
    // Predicated region
    $region2: #{object_model_forward_batched.1} parent=1 // pred_check
      _
    $region3: #{object_model_forward_batched.1} parent=1 // pred_check_branch
      %10 = sbr.rel (0) target = $region5
    $region4: #{object_model_forward_batched.1} parent=1 // pred_region
      _
    $region5: #{object_model_forward_batched.1} parent=1 // pred_fallthru
      _
    // Predicated region
    $region6: #{object_model_forward_batched.1} parent=1 // pred_check
      _
    $region7: #{object_model_forward_batched.1} parent=1 // pred_check_branch
      %12 = sbr.rel (0) target = $region9
    $region8: #{object_model_forward_batched.1} parent=1 // pred_region
      _
    $region9: #{object_model_forward_batched.1} parent=1 // pred_fallthru
      _
    // Predicated region
    $region10: #{object_model_forward_batched.1} parent=1 // pred_check
      _
    $region11: #{object_model_forward_batched.1} parent=1 // pred_check_branch
      %14 = sbr.rel (0) target = $region13
    $region12: #{object_model_forward_batched.1} parent=1 // pred_region
      %s16 = ssub.s32 2048, 2048
      %17 = vsyncadd [#allocation3], %s16
      %s18 = sshll.u32 [#allocation2], 4
      %s19 = int_to_ptr.vmem [resolvable:$true] %s18
      %24 = dma.hbm_to_vmem [thread:$0]  %s2, 2048, %s19, [#allocation3], 64, 64, 4
    $region13: #{object_model_forward_batched.1} parent=1 // pred_fallthru
      _
    // Predicated region
    $region14: #{object_model_forward_batched.1} parent=1 // pred_check
      _
    $region15: #{object_model_forward_batched.1} parent=1 // pred_check_branch
      %26 = sbr.rel (0) target = $region17
    $region16: #{object_model_forward_batched.1} parent=1 // pred_region
      %27 = dma.done [#allocation3], 2048
    $region17: #{object_model_forward_batched.1} parent=1 // pred_fallthru
      _
    %v29 = vld [vmem:[%s1] sm:$0x1]
    %v30 = vld [vmem:[%s1 + $0x1] sm:$0x1]
    %v31 = vld [vmem:[%s1 + $0x2] sm:$0x1]
    %v32 = vld [vmem:[%s1 + $0x3] sm:$0x1]
    %v33 = vld [vmem:[%s0] sm:$0xff]
    %35 = vset.pattern.permute.xlu0 0
    %36 = vperm.xlu0 %35, %v33
    %v37 = vpop.permute.xlu0 %36
    %v39 = vlaneseq
    %v40 = vshrl.u32 %v39, 7
    %v41 = vsub.s32 0, %v40
    %v42 = vrot.slane %v29, %v41
    %v43 = vmul.f32 %v37, %v42
    %v44 = vlaneseq
    %v45 = vshrl.u32 %v44, 7
    %v46 = vsub.s32 0, %v45
    %v47 = vrot.slane %v30, %v46
    %v48 = vadd.f32 %v43, %v47
    %v49 = vmax.f32 %v48, 0.0
    %v50 = vpack.c.bf16 %v49, %v49
    %v51 = vld [vmem:[#allocation2] sm:$0xf]
    %v52 = vld [vmem:[#allocation2 + $0x4] sm:$0xf]
    %v53 = vld [vmem:[#allocation2 + $0x8] sm:$0xf]
    %v54 = vld [vmem:[#allocation2 + $0xc] sm:$0xf]
    %v55 = vld [vmem:[#allocation2 + $0x10] sm:$0xf]
    %v56 = vld [vmem:[#allocation2 + $0x14] sm:$0xf]
    %v57 = vld [vmem:[#allocation2 + $0x18] sm:$0xf]
    %v58 = vld [vmem:[#allocation2 + $0x1c] sm:$0xf]
    %v59 = vld [vmem:[#allocation2 + $0x20] sm:$0xf]
    %v60 = vld [vmem:[#allocation2 + $0x24] sm:$0xf]
    %v61 = vld [vmem:[#allocation2 + $0x28] sm:$0xf]
    %v62 = vld [vmem:[#allocation2 + $0x2c] sm:$0xf]
    %v63 = vld [vmem:[#allocation2 + $0x30] sm:$0xf]
    %v64 = vld [vmem:[#allocation2 + $0x34] sm:$0xf]
    %v65 = vld [vmem:[#allocation2 + $0x38] sm:$0xf]
    %v66 = vld [vmem:[#allocation2 + $0x3c] sm:$0xf]
    %v67 = vlaneseq
    %v68 = vshrl.u32 %v67, 7
    %v69 = vsub.s32 0, %v68
    %v70 = vrot.slane %v31, %v69
    %v87 = vunpack.c.l.b16 %v51
    %v88 = vunpack.c.l.b16 %v52
    %v89 = vunpack.c.l.b16 %v53
    %v90 = vunpack.c.l.b16 %v54
    %v91 = vunpack.c.l.b16 %v55
    %v92 = vunpack.c.l.b16 %v56
    %v93 = vunpack.c.l.b16 %v57
    %v94 = vunpack.c.l.b16 %v58
    %v95 = vunpack.c.l.b16 %v59
    %v96 = vunpack.c.l.b16 %v60
    %v97 = vunpack.c.l.b16 %v61
    %v98 = vunpack.c.l.b16 %v62
    %v99 = vunpack.c.l.b16 %v63
    %v100 = vunpack.c.l.b16 %v64
    %v101 = vunpack.c.l.b16 %v65
    %v102 = vunpack.c.l.b16 %v66
    %v103 = vpack.c.b16 %v88, %v87
    %v104 = vpack.c.b16 %v90, %v89
    %v105 = vpack.c.b16 %v92, %v91
    %v106 = vpack.c.b16 %v94, %v93
    %v107 = vpack.c.b16 %v96, %v95
    %v108 = vpack.c.b16 %v98, %v97
    %v109 = vpack.c.b16 %v100, %v99
    %v110 = vpack.c.b16 %v102, %v101
    %119 = vmatprep.subr.bf16.mxu0 0
    %120 = vmatpush1.bf16.msra.mxu0 %v110
    %121 = vmatprep.subr.bf16.mxu0 0
    %122 = vmatpush1.bf16.msra.mxu0 %v109
    %123 = vmatprep.subr.bf16.mxu0 0
    %124 = vmatpush1.bf16.msra.mxu0 %v108
    %125 = vmatprep.subr.bf16.mxu0 0
    %126 = vmatpush1.bf16.msra.mxu0 %v107
    %127 = vmatprep.subr.bf16.mxu0 0
    %128 = vmatpush1.bf16.msra.mxu0 %v106
    %129 = vmatprep.subr.bf16.mxu0 0
    %130 = vmatpush1.bf16.msra.mxu0 %v105
    %131 = vmatprep.subr.bf16.mxu0 0
    %132 = vmatpush1.bf16.msra.mxu0 %v104
    %133 = vmatprep.subr.bf16.mxu0 0
    %134 = vmatpush1.bf16.msra.mxu0 %v103
    %135 = vmatprep.subr.bf16.mxu0 0
    %136 = vmatpush2.bf16.msra.mxu0 0
    %137 = vmatprep.subr.bf16.mxu0 0
    %138 = vmatpush2.bf16.msra.mxu0 0
    %139 = vmatprep.subr.bf16.mxu0 0
    %140 = vmatpush2.bf16.msra.mxu0 0
    %141 = vmatprep.subr.bf16.mxu0 0
    %142 = vmatpush2.bf16.msra.mxu0 0
    %143 = vmatprep.subr.bf16.mxu0 0
    %144 = vmatpush2.bf16.msra.mxu0 0
    %145 = vmatprep.subr.bf16.mxu0 0
    %146 = vmatpush2.bf16.msra.mxu0 0
    %147 = vmatprep.subr.bf16.mxu0 0
    %148 = vmatpush2.bf16.msra.mxu0 0
    %149 = vmatprep.subr.bf16.mxu0 0
    %150 = vmatpush2.bf16.msra.mxu0 0
    %151 = vmatprep.mubr.bf16.mxu0 0
    %152 = vmatmul.mubr.bf16.gmra.mxu0 %v50
    %v153 = vpop.f32.mrf.mxu0
    %v154 = vadd.f32 %v70, %v153
    %v155 = vpop.f32.mrf.mxu0
    %v156 = vpop.f32.mrf.mxu0
    %v157 = vpop.f32.mrf.mxu0
    %158 = vdwg.mxu0
    %v159 = vmax.f32 %v154, 0.0
    %v160 = vpack.c.bf16 %v159, %v159
    %v161 = vld [vmem:[#allocation2 + $0x40] sm:$0xf]
    %v162 = vld [vmem:[#allocation2 + $0x44] sm:$0xf]
    %v163 = vld [vmem:[#allocation2 + $0x48] sm:$0xf]
    %v164 = vld [vmem:[#allocation2 + $0x4c] sm:$0xf]
    %v165 = vld [vmem:[#allocation2 + $0x50] sm:$0xf]
    %v166 = vld [vmem:[#allocation2 + $0x54] sm:$0xf]
    %v167 = vld [vmem:[#allocation2 + $0x58] sm:$0xf]
    %v168 = vld [vmem:[#allocation2 + $0x5c] sm:$0xf]
    %v169 = vld [vmem:[#allocation2 + $0x60] sm:$0xf]
    %v170 = vld [vmem:[#allocation2 + $0x64] sm:$0xf]
    %v171 = vld [vmem:[#allocation2 + $0x68] sm:$0xf]
    %v172 = vld [vmem:[#allocation2 + $0x6c] sm:$0xf]
    %v173 = vld [vmem:[#allocation2 + $0x70] sm:$0xf]
    %v174 = vld [vmem:[#allocation2 + $0x74] sm:$0xf]
    %v175 = vld [vmem:[#allocation2 + $0x78] sm:$0xf]
    %v176 = vld [vmem:[#allocation2 + $0x7c] sm:$0xf]
    %v177 = vlaneseq
    %v178 = vshrl.u32 %v177, 7
    %v179 = vsub.s32 0, %v178
    %v180 = vrot.slane %v32, %v179
    %v197 = vunpack.c.l.b16 %v161
    %v198 = vunpack.c.l.b16 %v162
    %v199 = vunpack.c.l.b16 %v163
    %v200 = vunpack.c.l.b16 %v164
    %v201 = vunpack.c.l.b16 %v165
    %v202 = vunpack.c.l.b16 %v166
    %v203 = vunpack.c.l.b16 %v167
    %v204 = vunpack.c.l.b16 %v168
    %v205 = vunpack.c.l.b16 %v169
    %v206 = vunpack.c.l.b16 %v170
    %v207 = vunpack.c.l.b16 %v171
    %v208 = vunpack.c.l.b16 %v172
    %v209 = vunpack.c.l.b16 %v173
    %v210 = vunpack.c.l.b16 %v174
    %v211 = vunpack.c.l.b16 %v175
    %v212 = vunpack.c.l.b16 %v176
    %v213 = vpack.c.b16 %v198, %v197
    %v214 = vpack.c.b16 %v200, %v199
    %v215 = vpack.c.b16 %v202, %v201
    %v216 = vpack.c.b16 %v204, %v203
    %v217 = vpack.c.b16 %v206, %v205
    %v218 = vpack.c.b16 %v208, %v207
    %v219 = vpack.c.b16 %v210, %v209
    %v220 = vpack.c.b16 %v212, %v211
    %229 = vmatprep.subr.bf16.mxu0 0
    %230 = vmatpush1.bf16.msra.mxu0 %v220
    %231 = vmatprep.subr.bf16.mxu0 0
    %232 = vmatpush1.bf16.msra.mxu0 %v219
    %233 = vmatprep.subr.bf16.mxu0 0
    %234 = vmatpush1.bf16.msra.mxu0 %v218
    %235 = vmatprep.subr.bf16.mxu0 0
    %236 = vmatpush1.bf16.msra.mxu0 %v217
    %237 = vmatprep.subr.bf16.mxu0 0
    %238 = vmatpush1.bf16.msra.mxu0 %v216
    %239 = vmatprep.subr.bf16.mxu0 0
    %240 = vmatpush1.bf16.msra.mxu0 %v215
    %241 = vmatprep.subr.bf16.mxu0 0
    %242 = vmatpush1.bf16.msra.mxu0 %v214
    %243 = vmatprep.subr.bf16.mxu0 0
    %244 = vmatpush1.bf16.msra.mxu0 %v213
    %245 = vmatprep.subr.bf16.mxu0 0
    %246 = vmatpush2.bf16.msra.mxu0 0
    %247 = vmatprep.subr.bf16.mxu0 0
    %248 = vmatpush2.bf16.msra.mxu0 0
    %249 = vmatprep.subr.bf16.mxu0 0
    %250 = vmatpush2.bf16.msra.mxu0 0
    %251 = vmatprep.subr.bf16.mxu0 0
    %252 = vmatpush2.bf16.msra.mxu0 0
    %253 = vmatprep.subr.bf16.mxu0 0
    %254 = vmatpush2.bf16.msra.mxu0 0
    %255 = vmatprep.subr.bf16.mxu0 0
    %256 = vmatpush2.bf16.msra.mxu0 0
    %257 = vmatprep.subr.bf16.mxu0 0
    %258 = vmatpush2.bf16.msra.mxu0 0
    %259 = vmatprep.subr.bf16.mxu0 0
    %260 = vmatpush2.bf16.msra.mxu0 0
    %261 = vmatprep.mubr.bf16.mxu0 0
    %262 = vmatmul.mubr.bf16.gmra.mxu0 %v160
    %v263 = vpop.f32.mrf.mxu0
    %v264 = vadd.f32 %v180, %v263
    %v265 = vpop.f32.mrf.mxu0
    %v266 = vpop.f32.mrf.mxu0
    %v267 = vpop.f32.mrf.mxu0
    %268 = vdwg.mxu0
    %269 = vst [vmem:[%s3] sm:$0xff] %v264
    // Predicated region
    $region18: #{object_model_forward_batched.1} parent=1 // pred_check
      _
    $region19: #{object_model_forward_batched.1} parent=1 // pred_check_branch
      %271 = sbr.rel (0) target = $region21
    $region20: #{object_model_forward_batched.1} parent=1 // pred_region
      _
    $region21: #{object_model_forward_batched.1} parent=1 // pred_fallthru
      _
    // Predicated region
    $region22: #{object_model_forward_batched.1} parent=1 // pred_check
      _
    $region23: #{object_model_forward_batched.1} parent=1 // pred_check_branch
      %273 = sbr.rel (0) target = $region25
    $region24: #{object_model_forward_batched.1} parent=1 // pred_region
      _
    $region25: #{object_model_forward_batched.1} parent=1 // pred_fallthru
      _
    %274 = vsyncpa [#allocation3], 1

</llo_original>
